<compile_context>
chip_gen: v6e
topology: v6e:2x2x1
jax: 0.10.0
libtpu: 0.0.40
codegen_flags: <defaults>
</compile_context>

<pallas_src>
import jax
import jax.numpy as jnp
from jax.experimental import pallas as pl
from jax.experimental.pallas import tpu as pltpu

EPS = 1e-12


def _round_up(x, m):
    return (x + m - 1) // m * m


def bert_self_output_kernel(hs_ref, inp_ref, w_ref, p_ref, o_ref):
    # dense: hidden_states @ W^T  (bf16 operands -> MXU, f32 accumulation)
    h = jnp.dot(hs_ref[...], w_ref[...], preferred_element_type=jnp.float32)
    bias = p_ref[0:1, :]
    gamma = p_ref[1:2, :]
    beta = p_ref[2:3, :]
    # TODO(synk): dropout omitted (inference mode: identity; no RNG mask applied)
    y = h + bias + inp_ref[...].astype(jnp.float32)
    # LayerNorm over the hidden (lane) dim, biased variance (BertLayerNorm).
    u = jnp.mean(y, axis=-1, keepdims=True)
    d = y - u
    s = jnp.mean(d * d, axis=-1, keepdims=True)
    inv = jax.lax.rsqrt(s + EPS)                 # EUP slot, ~free vs VALU
    o_ref[...] = (d * (gamma * inv) + beta).astype(o_ref.dtype)


def bert_self_output(hidden_states, input_tensor, w, b, gamma, beta,
                     tile_rows=256, matmul_dtype=jnp.bfloat16):
    """hidden_states, input_tensor: [B, S, H]; w: [H_out, H_in] (PyTorch layout)."""
    B, S, H = hidden_states.shape
    rows = B * S
    out_dtype = hidden_states.dtype

    # Tile sizing: multiple of 16 (bf16 sublane packing), capped by row count.
    tile_rows = max(16, min(int(tile_rows), _round_up(rows, 16)))
    tile_rows = _round_up(tile_rows, 16)
    rows_p = _round_up(rows, tile_rows)

    hs2 = hidden_states.reshape(rows, H).astype(matmul_dtype)
    in2 = input_tensor.reshape(rows, H)
    if rows_p != rows:
        pad = rows_p - rows
        hs2 = jnp.pad(hs2, ((0, pad), (0, 0)))
        in2 = jnp.pad(in2, ((0, pad), (0, 0)))

    wT = w.T.astype(matmul_dtype)                                  # (H_in, H_out)
    params = jnp.stack([b, gamma, beta]).astype(jnp.float32)       # (3, H)

    itm = jnp.dtype(matmul_dtype).itemsize
    iti = jnp.dtype(in2.dtype).itemsize
    ito = jnp.dtype(out_dtype).itemsize
    itf = 4
    # VMEM working set: single-buffered weight + params, double-buffered streams.
    work = (H * H * itm
            + 8 * H * itf
            + 2 * tile_rows * H * itm
            + 2 * tile_rows * H * iti
            + 2 * tile_rows * H * ito)
    vmem_limit = int(min(max(int(work * 1.5) + (2 << 20), 16 << 20), 100 << 20))

    cost = pl.CostEstimate(
        flops=2 * rows_p * H * H,
        transcendentals=rows_p,
        bytes_accessed=rows_p * H * (itm + iti + ito) + H * H * itm + 3 * H * itf,
    )

    grid = (rows_p // tile_rows,)
    out = pl.pallas_call(
        bert_self_output_kernel,
        out_shape=jax.ShapeDtypeStruct((rows_p, H), out_dtype),
        grid_spec=pltpu.PrefetchScalarGridSpec(
            num_scalar_prefetch=0,
            grid=grid,
            in_specs=[
                pl.BlockSpec((tile_rows, H), lambda i: (i, 0)),        # hidden_states (bf16)
                pl.BlockSpec((tile_rows, H), lambda i: (i, 0)),        # residual input (f32)
                pl.BlockSpec((H, H), lambda i: (0, 0),
                             pipeline_mode=pl.Buffered(1)),            # weight, resident
                pl.BlockSpec((3, H), lambda i: (0, 0),
                             pipeline_mode=pl.Buffered(1)),            # packed bias/gamma/beta
            ],
            out_specs=pl.BlockSpec((tile_rows, H), lambda i: (i, 0)),
        ),
        compiler_params=pltpu.CompilerParams(
            dimension_semantics=("parallel",),
            vmem_limit_bytes=vmem_limit,
        ),
        cost_estimate=cost,
    )(hs2, in2, wT, params)
    return out[:rows].reshape(B, S, H)


def reference_f32(hidden_states, input_tensor, w, b, gamma, beta):
    """Pure-f32 BertSelfOutput reference (inference: dropout = identity)."""
    h = jnp.einsum("bsh,oh->bso", hidden_states, w) + b
    y = h + input_tensor
    u = jnp.mean(y, axis=-1, keepdims=True)
    s = jnp.mean((y - u) ** 2, axis=-1, keepdims=True)
    x_hat = (y - u) / jnp.sqrt(s + EPS)
    return gamma * x_hat + beta


def reference_bf16_matmul(hidden_states, input_tensor, w, b, gamma, beta):
    """Same math but with bf16 matmul operands (matches kernel numerics)."""
    h = jnp.einsum("bsh,oh->bso",
                   hidden_states.astype(jnp.bfloat16),
                   w.astype(jnp.bfloat16),
                   preferred_element_type=jnp.float32) + b
    y = h + input_tensor
    u = jnp.mean(y, axis=-1, keepdims=True)
    s = jnp.mean((y - u) ** 2, axis=-1, keepdims=True)
    x_hat = (y - u) / jnp.sqrt(s + EPS)
    return gamma * x_hat + beta


if __name__ == "__main__":
    B, S, H = 2, 8, 32
    key = jax.random.PRNGKey(0)
    k1, k2, k3, k4 = jax.random.split(key, 4)
    hidden_states = jax.random.normal(k1, (B, S, H), dtype=jnp.float32)
    input_tensor = jax.random.normal(k2, (B, S, H), dtype=jnp.float32)
    # nn.Linear(H, H): weight (out, in), bias (out,)
    w = jax.random.normal(k3, (H, H), dtype=jnp.float32) * (1.0 / jnp.sqrt(H))
    b = jax.random.normal(k4, (H,), dtype=jnp.float32) * 0.01
    gamma = jnp.ones((H,), dtype=jnp.float32)
    beta = jnp.zeros((H,), dtype=jnp.float32)

    out = bert_self_output(hidden_states, input_tensor, w, b, gamma, beta)
    out = jax.block_until_ready(out)

    # Tight check vs a reference that uses the same bf16 matmul operands.
    ref_bf16 = reference_bf16_matmul(hidden_states, input_tensor, w, b, gamma, beta)
    assert jnp.allclose(out, ref_bf16, atol=2e-3, rtol=2e-3), "mismatch vs bf16-matched reference"

    # Looser check vs the pure-f32 module semantics (bf16 matmul rounding only).
    ref_f32 = reference_f32(hidden_states, input_tensor, w, b, gamma, beta)
    assert jnp.allclose(out, ref_f32, atol=5e-2, rtol=5e-2), "mismatch vs f32 reference"

    print("KERNEL_OK")
</pallas_src>

<mosaic_0001>
module attributes {stable_mosaic.version = 11 : i64} {
  func.func @bert_self_output_kernel(%arg0: i32, %arg1: memref<16x32xbf16, #tpu.memory_space<vmem>>, %arg2: memref<16x32xf32, #tpu.memory_space<vmem>>, %arg3: memref<32x32xbf16, #tpu.memory_space<vmem>>, %arg4: memref<3x32xf32, #tpu.memory_space<vmem>>, %arg5: memref<16x32xf32, #tpu.memory_space<vmem>>) attributes {dimension_semantics = [#tpu.dimension_semantics<parallel>], iteration_bounds = array<i64: 1>, scalar_prefetch = 0 : i64, scratch_operands = 0 : i64, tpu.core_type = #tpu.core_type<tc>, window_params = [{transform_indices = @transform_0, window_bounds = array<i64: 16, 32>}, {transform_indices = @transform_1, window_bounds = array<i64: 16, 32>}, {pipeline_mode = #tpu.pipeline_mode<synchronous>, transform_indices = @transform_2, window_bounds = array<i64: 32, 32>}, {pipeline_mode = #tpu.pipeline_mode<synchronous>, transform_indices = @transform_3, window_bounds = array<i64: 3, 32>}, {transform_indices = @transform_4, window_bounds = array<i64: 16, 32>}]} {
    %c0 = arith.constant 0 : index
    %c0_0 = arith.constant 0 : index
    %0 = vector.load %arg1[%c0, %c0_0] : memref<16x32xbf16, #tpu.memory_space<vmem>>, vector<16x32xbf16>
    %c0_1 = arith.constant 0 : index
    %c0_2 = arith.constant 0 : index
    %1 = vector.load %arg3[%c0_1, %c0_2] : memref<32x32xbf16, #tpu.memory_space<vmem>>, vector<32x32xbf16>
    %cst = arith.constant dense<0.000000e+00> : vector<16x32xf32>
    %2 = tpu.matmul %0, %1, %cst {dimension_numbers = #tpu.dot_dimension_numbers<[1], [0], [0], [1], [0, 0, 1, 1], [], []>} : vector<16x32xbf16>, vector<32x32xbf16>, vector<16x32xf32> -> vector<16x32xf32>
    %c0_3 = arith.constant 0 : index
    %c0_4 = arith.constant 0 : index
    %3 = vector.load %arg4[%c0_3, %c0_4] : memref<3x32xf32, #tpu.memory_space<vmem>>, vector<1x32xf32>
    %c1 = arith.constant 1 : index
    %c0_5 = arith.constant 0 : index
    %4 = vector.load %arg4[%c1, %c0_5] : memref<3x32xf32, #tpu.memory_space<vmem>>, vector<1x32xf32>
    %c2 = arith.constant 2 : index
    %c0_6 = arith.constant 0 : index
    %5 = vector.load %arg4[%c2, %c0_6] : memref<3x32xf32, #tpu.memory_space<vmem>>, vector<1x32xf32>
    %6 = vector.broadcast %3 : vector<1x32xf32> to vector<16x32xf32>
    %7 = arith.addf %2, %6 : vector<16x32xf32>
    %c0_7 = arith.constant 0 : index
    %c0_8 = arith.constant 0 : index
    %8 = vector.load %arg2[%c0_7, %c0_8] : memref<16x32xf32, #tpu.memory_space<vmem>>, vector<16x32xf32>
    %9 = arith.addf %7, %8 : vector<16x32xf32>
    %cst_9 = arith.constant dense<0.000000e+00> : vector<16xf32>
    %10 = vector.multi_reduction <add>, %9, %cst_9 [1] : vector<16x32xf32> to vector<16xf32>
    %11 = vector.shape_cast %10 : vector<16xf32> to vector<16x1xf32>
    %cst_10 = arith.constant 3.200000e+01 : f32
    %12 = vector.broadcast %cst_10 : f32 to vector<16x1xf32>
    %13 = arith.divf %11, %12 : vector<16x1xf32>
    %14 = vector.broadcast %13 : vector<16x1xf32> to vector<16x32xf32>
    %15 = arith.subf %9, %14 : vector<16x32xf32>
    %16 = arith.mulf %15, %15 : vector<16x32xf32>
    %cst_11 = arith.constant dense<0.000000e+00> : vector<16xf32>
    %17 = vector.multi_reduction <add>, %16, %cst_11 [1] : vector<16x32xf32> to vector<16xf32>
    %18 = vector.shape_cast %17 : vector<16xf32> to vector<16x1xf32>
    %cst_12 = arith.constant 3.200000e+01 : f32
    %19 = vector.broadcast %cst_12 : f32 to vector<16x1xf32>
    %20 = arith.divf %18, %19 : vector<16x1xf32>
    %cst_13 = arith.constant 9.99999996E-13 : f32
    %21 = vector.broadcast %cst_13 : f32 to vector<16x1xf32>
    %22 = arith.addf %20, %21 : vector<16x1xf32>
    %23 = math.rsqrt %22 : vector<16x1xf32>
    %24 = vector.broadcast %4 : vector<1x32xf32> to vector<16x32xf32>
    %25 = vector.broadcast %23 : vector<16x1xf32> to vector<16x32xf32>
    %26 = arith.mulf %24, %25 : vector<16x32xf32>
    %27 = arith.mulf %15, %26 : vector<16x32xf32>
    %28 = vector.broadcast %5 : vector<1x32xf32> to vector<16x32xf32>
    %29 = arith.addf %27, %28 : vector<16x32xf32>
    %c0_14 = arith.constant 0 : index
    %c0_15 = arith.constant 0 : index
    %30 = vector.load %arg5[%c0_14, %c0_15] : memref<16x32xf32, #tpu.memory_space<vmem>>, vector<16x32xf32>
    tpu.vector_store %arg5[%c0_14, %c0_15], %29 {strides = array<i32>} : memref<16x32xf32, #tpu.memory_space<vmem>>, vector<16x32xf32>,
    return
  }
  func.func @transform_0(%arg0: i32) -> (i32, i32) {
    %c0_i32 = arith.constant 0 : i32
    %c0_i32_0 = arith.constant 0 : i32
    return %arg0, %c0_i32 : i32, i32
  }
  func.func @transform_1(%arg0: i32) -> (i32, i32) {
    %c0_i32 = arith.constant 0 : i32
    %c0_i32_0 = arith.constant 0 : i32
    return %arg0, %c0_i32 : i32, i32
  }
  func.func @transform_2(%arg0: i32) -> (i32, i32) {
    %c0_i32 = arith.constant 0 : i32
    %c0_i32_0 = arith.constant 0 : i32
    %c0_i32_1 = arith.constant 0 : i32
    return %c0_i32, %c0_i32_0 : i32, i32
  }
  func.func @transform_3(%arg0: i32) -> (i32, i32) {
    %c0_i32 = arith.constant 0 : i32
    %c0_i32_0 = arith.constant 0 : i32
    %c0_i32_1 = arith.constant 0 : i32
    return %c0_i32, %c0_i32_0 : i32, i32
  }
  func.func @transform_4(%arg0: i32) -> (i32, i32) {
    %c0_i32 = arith.constant 0 : i32
    %c0_i32_0 = arith.constant 0 : i32
    return %arg0, %c0_i32 : i32, i32
  }
}

</mosaic_0001>

<llo_original>
// kernel: tpu_custom_call.1
$region0: #{tpu_custom_call.1}
  #allocation0 [shape = 'u32[]', space=smem, size = 0x4, offset = 0x4, fixed_abs, tag = 'smem constant byte address 0x4 - core index']
  #allocation1 [shape = 'u32[144,128]{1,0:T(1,128)}', space=vmem, size = 0x12000, scoped, tag = 'internal scratch']
  %s0 = inlined_call_operand.hbm [shape: bf16[16,32], index: 0, kind: input, shape index: {}]
  %s1 = inlined_call_operand.hbm [shape: f32[16,32], index: 1, kind: input, shape index: {}]
  %s2 = inlined_call_operand.hbm [shape: bf16[32,32], index: 2, kind: input, shape index: {}]
  %s3 = inlined_call_operand.vmem [shape: f32[3,32], index: 3, kind: input, shape index: {}]
  %s4 = inlined_call_operand.hbm [shape: f32[16,32], index: 4, kind: output, shape index: {}]
  %s5 = sld [smem:[#allocation0]]
  $region38: #{tpu_custom_call.1} parent=0
    _
  %s7 = ssub.s32 1, %s5
  %s8 = scalar_select 0, %s7, %s5
  $region1: #{tpu_custom_call.1} parent=0
    #allocation2 [shape = 'u8[4096]{0}', space=vmem, size = 0x1000, scoped, tag = 'input window, operand 0, single buffered']
    #allocation3 [shape = 's32[1]{0}', space=sflag, size = 0x4, scoped, tag = 'scoped memory for tpu_custom_call.1']
    #allocation4 [shape = 's32[1]{0}', space=sflag, size = 0x4, scoped, tag = 'scoped memory for tpu_custom_call.1']
    #allocation5 [shape = 'u8[8192]{0}', space=vmem, size = 0x2000, scoped, tag = 'input window, operand 1, single buffered']
    #allocation6 [shape = 's32[1]{0}', space=sflag, size = 0x4, scoped, tag = 'scoped memory for tpu_custom_call.1']
    #allocation7 [shape = 'u8[8192]{0}', space=vmem, size = 0x2000, scoped, tag = 'input window, operand 2, single buffered']
    #allocation8 [shape = 'u8[8192]{0}', space=vmem, size = 0x2000, scoped, tag = 'output window, operand 0, single buffered']
    %9 = vsyncpa [#allocation3], 0
    %10 = vsyncpa [#allocation6], 0
    %11 = vsyncpa [#allocation4], 0
    // Predicated region
    $region2: #{tpu_custom_call.1} parent=1 // pred_check
      _
    $region3: #{tpu_custom_call.1} parent=1 // pred_check_branch
      %13 = sbr.rel (0) target = $region5
    $region4: #{tpu_custom_call.1} parent=1 // pred_region
      %s15 = ssub.s32 128, 128
      %16 = vsyncadd [#allocation3], %s15
      %s17 = sshll.u32 [#allocation2], 4
      %s18 = int_to_ptr.vmem [resolvable:$true] %s17
      %23 = dma.hbm_to_vmem [thread:$0]  %s0, 128, %s18, [#allocation3], 64, 64, 4
    $region5: #{tpu_custom_call.1} parent=1 // pred_fallthru
      _
    // Predicated region
    $region6: #{tpu_custom_call.1} parent=1 // pred_check
      _
    $region7: #{tpu_custom_call.1} parent=1 // pred_check_branch
      %25 = sbr.rel (0) target = $region9
    $region8: #{tpu_custom_call.1} parent=1 // pred_region
      %s27 = ssub.s32 256, 256
      %28 = vsyncadd [#allocation6], %s27
      %s29 = sshll.u32 [#allocation5], 4
      %s30 = int_to_ptr.vmem [resolvable:$true] %s29
      %35 = dma.hbm_to_vmem [thread:$0]  %s1, 256, %s30, [#allocation6], 128, 128, 8
    $region9: #{tpu_custom_call.1} parent=1 // pred_fallthru
      _
    // Predicated region
    $region10: #{tpu_custom_call.1} parent=1 // pred_check
      _
    $region11: #{tpu_custom_call.1} parent=1 // pred_check_branch
      %37 = sbr.rel (0) target = $region13
    $region12: #{tpu_custom_call.1} parent=1 // pred_region
      %s39 = ssub.s32 256, 256
      %40 = vsyncadd [#allocation6], %s39
      %s41 = sshll.u32 [#allocation7], 4
      %s42 = int_to_ptr.vmem [resolvable:$true] %s41
      %47 = dma.hbm_to_vmem [thread:$0]  %s2, 256, %s42, [#allocation6], 64, 64, 4
    $region13: #{tpu_custom_call.1} parent=1 // pred_fallthru
      _
    // Predicated region
    $region14: #{tpu_custom_call.1} parent=1 // pred_check
      _
    $region15: #{tpu_custom_call.1} parent=1 // pred_check_branch
      %49 = sbr.rel (0) target = $region17
    $region16: #{tpu_custom_call.1} parent=1 // pred_region
      _
    $region17: #{tpu_custom_call.1} parent=1 // pred_fallthru
      _
    // Predicated region
    $region18: #{tpu_custom_call.1} parent=1 // pred_check
      _
    $region19: #{tpu_custom_call.1} parent=1 // pred_check_branch
      %51 = sbr.rel (0) target = $region21
    $region20: #{tpu_custom_call.1} parent=1 // pred_region
      %52 = dma.done [#allocation3], 128
    $region21: #{tpu_custom_call.1} parent=1 // pred_fallthru
      _
    // Predicated region
    $region22: #{tpu_custom_call.1} parent=1 // pred_check
      _
    $region23: #{tpu_custom_call.1} parent=1 // pred_check_branch
      %54 = sbr.rel (0) target = $region25
    $region24: #{tpu_custom_call.1} parent=1 // pred_region
      %55 = dma.done [#allocation6], 256
    $region25: #{tpu_custom_call.1} parent=1 // pred_fallthru
      _
    // Predicated region
    $region26: #{tpu_custom_call.1} parent=1 // pred_check
      _
    $region27: #{tpu_custom_call.1} parent=1 // pred_check_branch
      %57 = sbr.rel (0) target = $region29
    $region28: #{tpu_custom_call.1} parent=1 // pred_region
      %58 = dma.done [#allocation6], 256
    $region29: #{tpu_custom_call.1} parent=1 // pred_fallthru
      _
    %v60 = vld [vmem:[#allocation2] sm:$0xf]
    %v61 = vld [vmem:[#allocation2 + $0x4] sm:$0xf]
    %v62 = vld [vmem:[#allocation7] sm:$0xf]
    %v63 = vld [vmem:[#allocation7 + $0x4] sm:$0xf]
    %v64 = vld [vmem:[#allocation7 + $0x8] sm:$0xf]
    %v65 = vld [vmem:[#allocation7 + $0xc] sm:$0xf]
    %v66 = vld [vmem:[%s3] sm:$0x1]
    %v67 = vld [vmem:[%s3 + $0x1] sm:$0x1]
    %v68 = vld [vmem:[%s3 + $0x2] sm:$0x1]
    %v69 = vlaneseq
    %v70 = vshrl.u32 %v69, 7
    %v71 = vsub.s32 0, %v70
    %v72 = vrot.slane %v66, %v71
    %v75 = vunpack.c.l.b16 %v60
    %v76 = vunpack.c.l.b16 %v61
    %v77 = vpack.c.b16 %v76, %v75
    %v82 = vunpack.c.l.b16 %v62
    %v83 = vunpack.c.l.b16 %v63
    %v84 = vunpack.c.l.b16 %v64
    %v85 = vunpack.c.l.b16 %v65
    %v86 = vpack.c.b16 %v83, %v82
    %v87 = vpack.c.b16 %v85, %v84
    %vm90 = vcmask 261120
    %v92 = vsel %vm90, %v77, 0
    %94 = vmatprep.subr.bf16.mxu0 0
    %95 = vmatpush1.bf16.msra.mxu0 0
    %96 = vmatprep.subr.bf16.mxu0 0
    %97 = vmatpush1.bf16.msra.mxu0 0
    %98 = vmatprep.subr.bf16.mxu0 0
    %99 = vmatpush1.bf16.msra.mxu0 0
    %100 = vmatprep.subr.bf16.mxu0 0
    %101 = vmatpush1.bf16.msra.mxu0 0
    %102 = vmatprep.subr.bf16.mxu0 0
    %103 = vmatpush1.bf16.msra.mxu0 0
    %104 = vmatprep.subr.bf16.mxu0 0
    %105 = vmatpush1.bf16.msra.mxu0 0
    %106 = vmatprep.subr.bf16.mxu0 0
    %107 = vmatpush1.bf16.msra.mxu0 %v87
    %108 = vmatprep.subr.bf16.mxu0 0
    %109 = vmatpush1.bf16.msra.mxu0 %v86
    %110 = vmatprep.subr.bf16.mxu0 0
    %111 = vmatpush2.bf16.msra.mxu0 0
    %112 = vmatprep.subr.bf16.mxu0 0
    %113 = vmatpush2.bf16.msra.mxu0 0
    %114 = vmatprep.subr.bf16.mxu0 0
    %115 = vmatpush2.bf16.msra.mxu0 0
    %116 = vmatprep.subr.bf16.mxu0 0
    %117 = vmatpush2.bf16.msra.mxu0 0
    %118 = vmatprep.subr.bf16.mxu0 0
    %119 = vmatpush2.bf16.msra.mxu0 0
    %120 = vmatprep.subr.bf16.mxu0 0
    %121 = vmatpush2.bf16.msra.mxu0 0
    %122 = vmatprep.subr.bf16.mxu0 0
    %123 = vmatpush2.bf16.msra.mxu0 0
    %124 = vmatprep.subr.bf16.mxu0 0
    %125 = vmatpush2.bf16.msra.mxu0 0
    %126 = vmatprep.mubr.bf16.mxu0 0
    %127 = vmatmul.mubr.bf16.gmra.mxu0 %v92
    %v128 = vpop.f32.mrf.mxu0
    %v129 = vadd.f32 %v72, %v128
    %v130 = vpop.f32.mrf.mxu0
    %v131 = vpop.f32.mrf.mxu0
    %v132 = vadd.f32 %v72, %v131
    %v133 = vpop.f32.mrf.mxu0
    %134 = vdwg.mxu0
    %v135 = vld [vmem:[#allocation5] sm:$0xff]
    %v136 = vld [vmem:[#allocation5 + $0x8] sm:$0xff]
    %v137 = vadd.f32 %v129, %v135
    %v138 = vadd.f32 %v132, %v136
    %v139 = vsel %vm90, %v137, 0.0
    %140 = vadd.xlane.f32.xlu0 %v139
    %v141 = vpop.xlane.xlu0 %140
    %v142 = vsel %vm90, %v138, 0.0
    %143 = vadd.xlane.f32.xlu0 %v142
    %v144 = vpop.xlane.xlu0 %143
    %v145 = vrcp.pop 32.0
    %v146 = vmul.f32 %v141, %v145
    %v147 = vmul.f32 %v144, %v145
    %v148 = vsub.f32 %v137, %v146
    %v149 = vsub.f32 %v138, %v147
    %v150 = vmul.f32 %v148, %v148
    %v151 = vmul.f32 %v149, %v149
    %v152 = vsel %vm90, %v150, 0.0
    %153 = vadd.xlane.f32.xlu0 %v152
    %v154 = vpop.xlane.xlu0 %153
    %v155 = vsel %vm90, %v151, 0.0
    %156 = vadd.xlane.f32.xlu0 %v155
    %v157 = vpop.xlane.xlu0 %156
    %v158 = vmul.f32 %v154, %v145
    %v159 = vmul.f32 %v157, %v145
    %v160 = vadd.f32 %v158, 1e-12
    %v161 = vadd.f32 %v159, 1e-12
    %v162 = vrsqrt.pop %v160
    %v163 = vrsqrt.pop %v161
    %v164 = vlaneseq
    %v165 = vshrl.u32 %v164, 7
    %v166 = vsub.s32 0, %v165
    %v167 = vrot.slane %v67, %v166
    %v168 = vmul.f32 %v167, %v162
    %v169 = vmul.f32 %v167, %v163
    %v170 = vmul.f32 %v148, %v168
    %v171 = vmul.f32 %v149, %v169
    %v172 = vlaneseq
    %v173 = vshrl.u32 %v172, 7
    %v174 = vsub.s32 0, %v173
    %v175 = vrot.slane %v68, %v174
    %v176 = vadd.f32 %v170, %v175
    %v177 = vadd.f32 %v171, %v175
    %178 = vst.msk [vmem:[#allocation8] sm:$0xff] %vm90, %v176
    %179 = vst.msk [vmem:[#allocation8 + $0x8] sm:$0xff] %vm90, %v177
    // Predicated region
    $region30: #{tpu_custom_call.1} parent=1 // pred_check
      _
    $region31: #{tpu_custom_call.1} parent=1 // pred_check_branch
      %181 = sbr.rel (0) target = $region33
    $region32: #{tpu_custom_call.1} parent=1 // pred_region
      %s183 = ssub.s32 256, 256
      %184 = vsyncadd [#allocation4], %s183
      %s185 = sshll.u32 [#allocation8], 4
      %s186 = int_to_ptr.vmem [resolvable:$true] %s185
      %191 = dma.vmem_to_hbm [thread:$0]  %s186, 256, %s4, [#allocation4], 128, 128, 8
    $region33: #{tpu_custom_call.1} parent=1 // pred_fallthru
      _
    // Predicated region
    $region34: #{tpu_custom_call.1} parent=1 // pred_check
      _
    $region35: #{tpu_custom_call.1} parent=1 // pred_check_branch
      %193 = sbr.rel (0) target = $region37
    $region36: #{tpu_custom_call.1} parent=1 // pred_region
      %194 = dma.done [#allocation4], 256
    $region37: #{tpu_custom_call.1} parent=1 // pred_fallthru
      _
    %195 = vsyncpa [#allocation3], 1
    %196 = vsyncpa [#allocation6], 1
    %197 = vsyncpa [#allocation4], 1

</llo_original>
